<compile_context>
chip_gen: v6e
topology: v6e:2x2x1
jax: 0.10.0
libtpu: 0.0.40
codegen_flags: <defaults>
</compile_context>

<pallas_src>
import jax
import jax.numpy as jnp
from jax.experimental import pallas as pl
from jax.experimental.pallas import tpu as pltpu


def _pick_hw_tile(hw, b_blk, c, itemsize):
    """Choose the spatial tile width: multiple of 128 (or full HW), capped so a
    double-buffered input block stays a few MiB (safe on v7x's 64 MiB VMEM)."""
    if hw <= 128:
        return hw
    budget = 4 * 1024 * 1024  # bytes per input block (x2 for double buffering)
    by_mem = max(128, budget // max(1, b_blk * c * itemsize))
    t = min(2048, hw, by_mem)
    t = max(128, (t // 128) * 128)
    return t


def _make_kernel(hw_total, hw_tile, lane, b_blk, b_pad, needs_mask):
    n_chunks = hw_tile // lane

    def kernel(x_ref, w1_ref, w2_ref, o_ref, sum_acc, max_acc, pooled_scr):
        k = pl.program_id(1)

        @pl.when(k == 0)
        def _init():
            sum_acc[...] = jnp.zeros_like(sum_acc)
            max_acc[...] = jnp.full_like(max_acc, -jnp.inf)

        # ---- per-tile VPU accumulation (no per-step cross-lane reduce) ----
        x = x_ref[...]                     # (b_blk, C, hw_tile), native dtype
        c_dim = x.shape[1]
        s = sum_acc[...]
        m = max_acc[...]
        if needs_mask:
            lane_idx = jax.lax.broadcasted_iota(
                jnp.int32, (b_blk, c_dim, lane), 2)
        for j in range(n_chunks):          # static, fully unrolled
            chunk = x[:, :, j * lane:(j + 1) * lane].astype(jnp.float32)
            if needs_mask:
                valid = (k * hw_tile + j * lane + lane_idx) < hw_total
                s = s + jnp.where(valid, chunk, 0.0)
                m = jnp.maximum(m, jnp.where(valid, chunk, -jnp.inf))
            else:
                s = s + chunk
                m = jnp.maximum(m, chunk)
        sum_acc[...] = s
        max_acc[...] = m

        # ---- epilogue: single XLU reduce + fused FC + sigmoid ----
        @pl.when(k == pl.num_programs(1) - 1)
        def _finalize():
            avg = jnp.sum(sum_acc[...], axis=-1) * (1.0 / hw_total)  # (b_blk, C)
            mx = jnp.max(max_acc[...], axis=-1)                      # (b_blk, C)

            # Stack avg/max at sublane-aligned offsets -> one MXU pass for both.
            pooled_scr[...] = jnp.zeros_like(pooled_scr)
            pooled_scr[0:b_blk, :] = avg
            pooled_scr[b_pad:b_pad + b_blk, :] = mx

            w1 = w1_ref[...].astype(jnp.float32)                     # (C, Ch)
            w2 = w2_ref[...].astype(jnp.float32)                     # (Ch, C)
            h = jnp.maximum(
                jnp.dot(pooled_scr[...], w1,
                        preferred_element_type=jnp.float32), 0.0)    # (2*b_pad, Ch)
            y = jnp.dot(h, w2, preferred_element_type=jnp.float32)   # (2*b_pad, C)

            out = jax.nn.sigmoid(y[0:b_blk] + y[b_pad:b_pad + b_blk])
            o_ref[...] = out.astype(o_ref.dtype)

    return kernel


def channel_attention(x_nchw, w1_torch, w2_torch):
    """x_nchw: (B, C, H, W); w1_torch: (Ch, C, 1, 1); w2_torch: (C, Ch, 1, 1).

    Returns sigmoid(fc(avg_pool(x)) + fc(max_pool(x))) of shape (B, C, 1, 1),
    matching the PyTorch ChannelAttention forward.
    """
    B, C, H, W = x_nchw.shape
    Ch = w1_torch.shape[0]
    HW = H * W
    x_flat = x_nchw.reshape(B, C, HW)

    # 1x1 conv weights -> matmul weights (channels contract).
    w1 = w1_torch.reshape(Ch, C).T   # (C, Ch)
    w2 = w2_torch.reshape(C, Ch).T   # (Ch, C)

    # Batch blocking: sublane-aligned blocks when possible.
    b_blk = 8 if (B > 8 and B % 8 == 0) else B
    b_pad = ((b_blk + 7) // 8) * 8

    itemsize = x_nchw.dtype.itemsize
    hw_tile = _pick_hw_tile(HW, b_blk, C, itemsize)
    lane = 128 if hw_tile >= 128 else hw_tile
    n_hw = pl.cdiv(HW, hw_tile)
    needs_mask = (HW % hw_tile) != 0

    kernel = _make_kernel(HW, hw_tile, lane, b_blk, b_pad, needs_mask)

    # VMEM budget: double-buffered input block + f32 accumulators + weights.
    x_block_bytes = b_blk * C * hw_tile * itemsize
    acc_bytes = 2 * b_blk * C * lane * 4
    w_bytes = 2 * 2 * C * Ch * w1.dtype.itemsize
    misc_bytes = 2 * b_pad * C * 4 + 2 * b_blk * C * itemsize
    est = 2 * x_block_bytes + acc_bytes + w_bytes + misc_bytes
    vmem_limit = int(min(max(2 * est, 8 * 1024 * 1024), 32 * 1024 * 1024))

    out = pl.pallas_call(
        kernel,
        out_shape=jax.ShapeDtypeStruct((B, C), x_nchw.dtype),
        grid=(B // b_blk, n_hw),
        in_specs=[
            pl.BlockSpec((b_blk, C, hw_tile), lambda b, k: (b, 0, k)),
            pl.BlockSpec((C, Ch), lambda b, k: (0, 0)),
            pl.BlockSpec((Ch, C), lambda b, k: (0, 0)),
        ],
        out_specs=pl.BlockSpec((b_blk, C), lambda b, k: (b, 0)),
        scratch_shapes=[
            pltpu.VMEM((b_blk, C, lane), jnp.float32),   # running sum
            pltpu.VMEM((b_blk, C, lane), jnp.float32),   # running max
            pltpu.VMEM((2 * b_pad, C), jnp.float32),     # stacked pooled vecs
        ],
        compiler_params=pltpu.CompilerParams(
            dimension_semantics=("parallel", "arbitrary"),
            vmem_limit_bytes=vmem_limit),
    )(x_flat, w1, w2)

    return out.reshape(B, C, 1, 1)


def _init_params(key, in_planes):
    """Deterministic init mirroring nn.Conv2d default (kaiming-uniform-ish)."""
    hidden = in_planes // 16  # module hardcodes 16 regardless of `ratio`
    k1, k2 = jax.random.split(key)
    bound1 = 1.0 / (in_planes ** 0.5)
    bound2 = 1.0 / (hidden ** 0.5)
    w1 = jax.random.uniform(k1, (hidden, in_planes, 1, 1),
                            minval=-bound1, maxval=bound1, dtype=jnp.float32)
    w2 = jax.random.uniform(k2, (in_planes, hidden, 1, 1),
                            minval=-bound2, maxval=bound2, dtype=jnp.float32)
    return w1, w2


def _reference(x, w1, w2):
    B, C, H, W = x.shape
    Ch = w1.shape[0]
    avg = jnp.mean(x, axis=(2, 3))
    mx = jnp.max(x, axis=(2, 3))
    w1m = w1.reshape(Ch, C).T
    w2m = w2.reshape(C, Ch).T
    fc = lambda p: jnp.maximum(p @ w1m, 0.0) @ w2m
    return jax.nn.sigmoid(fc(avg) + fc(mx)).reshape(B, C, 1, 1)


if __name__ == "__main__":
    key = jax.random.PRNGKey(0)

    # (B, C, H, W): aligned single-tile, masked multi-tile, multi-batch-block.
    shapes = [(2, 32, 16, 16), (2, 32, 24, 24), (16, 32, 16, 16)]

    for (B, C, H, W) in shapes:
        key, kx, kp = jax.random.split(key, 3)
        x = jax.random.normal(kx, (B, C, H, W), dtype=jnp.float32)
        w1, w2 = _init_params(kp, C)

        out = channel_attention(x, w1, w2)
        jax.block_until_ready(out)

        ref = _reference(x, w1, w2)
        assert out.shape == (B, C, 1, 1)
        assert jnp.allclose(out, ref, atol=1e-5, rtol=1e-5), (B, C, H, W)

    print("KERNEL_OK")
</pallas_src>

<mosaic_0001>
module attributes {stable_mosaic.version = 11 : i64} {
  func.func @kernel(%arg0: i32, %arg1: i32, %arg2: memref<2x32x256xf32, #tpu.memory_space<vmem>>, %arg3: memref<32x2xf32, #tpu.memory_space<vmem>>, %arg4: memref<2x32xf32, #tpu.memory_space<vmem>>, %arg5: memref<2x32xf32, #tpu.memory_space<vmem>>, %arg6: memref<2x32x128xf32, #tpu.memory_space<vmem>>, %arg7: memref<2x32x128xf32, #tpu.memory_space<vmem>>, %arg8: memref<16x32xf32, #tpu.memory_space<vmem>>) attributes {dimension_semantics = [#tpu.dimension_semantics<parallel>, #tpu.dimension_semantics<arbitrary>], iteration_bounds = array<i64: 1, 1>, scalar_prefetch = 0 : i64, scratch_operands = 3 : i64, tpu.core_type = #tpu.core_type<tc>, window_params = [{transform_indices = @transform_0, window_bounds = array<i64: 2, 32, 256>}, {pipeline_mode = #tpu.pipeline_mode<synchronous>, transform_indices = @transform_1, window_bounds = array<i64: 32, 2>}, {pipeline_mode = #tpu.pipeline_mode<synchronous>, transform_indices = @transform_2, window_bounds = array<i64: 2, 32>}, {transform_indices = @transform_3, window_bounds = array<i64: 2, 32>}]} {
    %c0_i32 = arith.constant 0 : i32
    %0 = arith.cmpi eq, %arg1, %c0_i32 : i32
    %1 = arith.extui %0 : i1 to i32
    %c0_i32_0 = arith.constant 0 : i32
    %2 = arith.cmpi ne, %1, %c0_i32_0 : i32
    scf.if %2 {
      %cst = arith.constant 0.000000e+00 : f32
      %17 = vector.broadcast %cst : f32 to vector<2x32x128xf32>
      %c0_17 = arith.constant 0 : index
      %c0_18 = arith.constant 0 : index
      %c0_19 = arith.constant 0 : index
      %18 = vector.load %arg6[%c0_17, %c0_18, %c0_19] : memref<2x32x128xf32, #tpu.memory_space<vmem>>, vector<2x32x128xf32>
      tpu.vector_store %arg6[%c0_17, %c0_18, %c0_19], %17 {strides = array<i32>} : memref<2x32x128xf32, #tpu.memory_space<vmem>>, vector<2x32x128xf32>,
      %cst_20 = arith.constant 0xFF800000 : f32
      %19 = vector.broadcast %cst_20 : f32 to vector<2x32x128xf32>
      %c0_21 = arith.constant 0 : index
      %c0_22 = arith.constant 0 : index
      %c0_23 = arith.constant 0 : index
      %20 = vector.load %arg7[%c0_21, %c0_22, %c0_23] : memref<2x32x128xf32, #tpu.memory_space<vmem>>, vector<2x32x128xf32>
      tpu.vector_store %arg7[%c0_21, %c0_22, %c0_23], %19 {strides = array<i32>} : memref<2x32x128xf32, #tpu.memory_space<vmem>>, vector<2x32x128xf32>,
    } else {
    }
    %c0 = arith.constant 0 : index
    %c0_1 = arith.constant 0 : index
    %c0_2 = arith.constant 0 : index
    %3 = vector.load %arg2[%c0, %c0_1, %c0_2] : memref<2x32x256xf32, #tpu.memory_space<vmem>>, vector<2x32x256xf32>
    %c0_3 = arith.constant 0 : index
    %c0_4 = arith.constant 0 : index
    %c0_5 = arith.constant 0 : index
    %4 = vector.load %arg6[%c0_3, %c0_4, %c0_5] : memref<2x32x128xf32, #tpu.memory_space<vmem>>, vector<2x32x128xf32>
    %c0_6 = arith.constant 0 : index
    %c0_7 = arith.constant 0 : index
    %c0_8 = arith.constant 0 : index
    %5 = vector.load %arg7[%c0_6, %c0_7, %c0_8] : memref<2x32x128xf32, #tpu.memory_space<vmem>>, vector<2x32x128xf32>
    %6 = vector.extract_strided_slice %3 {offsets = [0, 0, 0], sizes = [2, 32, 128], strides = [1, 1, 1]} : vector<2x32x256xf32> to vector<2x32x128xf32>
    %7 = arith.addf %4, %6 : vector<2x32x128xf32>
    %8 = arith.maximumf %5, %6 : vector<2x32x128xf32>
    %9 = vector.extract_strided_slice %3 {offsets = [0, 0, 128], sizes = [2, 32, 128], strides = [1, 1, 1]} : vector<2x32x256xf32> to vector<2x32x128xf32>
    %10 = arith.addf %7, %9 : vector<2x32x128xf32>
    %11 = arith.maximumf %8, %9 : vector<2x32x128xf32>
    %c0_9 = arith.constant 0 : index
    %c0_10 = arith.constant 0 : index
    %c0_11 = arith.constant 0 : index
    %12 = vector.load %arg6[%c0_9, %c0_10, %c0_11] : memref<2x32x128xf32, #tpu.memory_space<vmem>>, vector<2x32x128xf32>
    tpu.vector_store %arg6[%c0_9, %c0_10, %c0_11], %10 {strides = array<i32>} : memref<2x32x128xf32, #tpu.memory_space<vmem>>, vector<2x32x128xf32>,
    %c0_12 = arith.constant 0 : index
    %c0_13 = arith.constant 0 : index
    %c0_14 = arith.constant 0 : index
    %13 = vector.load %arg7[%c0_12, %c0_13, %c0_14] : memref<2x32x128xf32, #tpu.memory_space<vmem>>, vector<2x32x128xf32>
    tpu.vector_store %arg7[%c0_12, %c0_13, %c0_14], %11 {strides = array<i32>} : memref<2x32x128xf32, #tpu.memory_space<vmem>>, vector<2x32x128xf32>,
    %c0_i32_15 = arith.constant 0 : i32
    %14 = arith.cmpi eq, %arg1, %c0_i32_15 : i32
    %15 = arith.extui %14 : i1 to i32
    %c0_i32_16 = arith.constant 0 : i32
    %16 = arith.cmpi ne, %15, %c0_i32_16 : i32
    scf.if %16 {
      %c0_17 = arith.constant 0 : index
      %c0_18 = arith.constant 0 : index
      %c0_19 = arith.constant 0 : index
      %17 = vector.load %arg6[%c0_17, %c0_18, %c0_19] : memref<2x32x128xf32, #tpu.memory_space<vmem>>, vector<2x32x128xf32>
      %cst = arith.constant dense<0.000000e+00> : vector<2x32xf32>
      %18 = vector.multi_reduction <add>, %17, %cst [2] : vector<2x32x128xf32> to vector<2x32xf32>
      %cst_20 = arith.constant 3.906250e-03 : f32
      %19 = vector.broadcast %cst_20 : f32 to vector<2x32xf32>
      %20 = arith.mulf %18, %19 : vector<2x32xf32>
      %c0_21 = arith.constant 0 : index
      %c0_22 = arith.constant 0 : index
      %c0_23 = arith.constant 0 : index
      %21 = vector.load %arg7[%c0_21, %c0_22, %c0_23] : memref<2x32x128xf32, #tpu.memory_space<vmem>>, vector<2x32x128xf32>
      %cst_24 = arith.constant dense<0xFF800000> : vector<2x32xf32>
      %22 = vector.multi_reduction <maximumf>, %21, %cst_24 [2] : vector<2x32x128xf32> to vector<2x32xf32>
      %cst_25 = arith.constant 0.000000e+00 : f32
      %23 = vector.broadcast %cst_25 : f32 to vector<16x32xf32>
      %c0_26 = arith.constant 0 : index
      %c0_27 = arith.constant 0 : index
      %24 = vector.load %arg8[%c0_26, %c0_27] : memref<16x32xf32, #tpu.memory_space<vmem>>, vector<16x32xf32>
      tpu.vector_store %arg8[%c0_26, %c0_27], %23 {strides = array<i32>} : memref<16x32xf32, #tpu.memory_space<vmem>>, vector<16x32xf32>,
      %c0_28 = arith.constant 0 : index
      %c0_29 = arith.constant 0 : index
      %25 = vector.load %arg8[%c0_28, %c0_29] : memref<16x32xf32, #tpu.memory_space<vmem>>, vector<2x32xf32>
      tpu.vector_store %arg8[%c0_28, %c0_29], %20 {strides = array<i32>} : memref<16x32xf32, #tpu.memory_space<vmem>>, vector<2x32xf32>,
      %c8 = arith.constant 8 : index
      %c0_30 = arith.constant 0 : index
      %26 = vector.load %arg8[%c8, %c0_30] : memref<16x32xf32, #tpu.memory_space<vmem>>, vector<2x32xf32>
      tpu.vector_store %arg8[%c8, %c0_30], %22 {strides = array<i32>} : memref<16x32xf32, #tpu.memory_space<vmem>>, vector<2x32xf32>,
      %c0_31 = arith.constant 0 : index
      %c0_32 = arith.constant 0 : index
      %27 = vector.load %arg3[%c0_31, %c0_32] : memref<32x2xf32, #tpu.memory_space<vmem>>, vector<32x2xf32>
      %c0_33 = arith.constant 0 : index
      %c0_34 = arith.constant 0 : index
      %28 = vector.load %arg4[%c0_33, %c0_34] : memref<2x32xf32, #tpu.memory_space<vmem>>, vector<2x32xf32>
      %c0_35 = arith.constant 0 : index
      %c0_36 = arith.constant 0 : index
      %29 = vector.load %arg8[%c0_35, %c0_36] : memref<16x32xf32, #tpu.memory_space<vmem>>, vector<16x32xf32>
      %cst_37 = arith.constant dense<0.000000e+00> : vector<16x2xf32>
      %30 = tpu.matmul %29, %27, %cst_37 {dimension_numbers = #tpu.dot_dimension_numbers<[1], [0], [0], [1], [0, 0, 1, 1], [], []>} : vector<16x32xf32>, vector<32x2xf32>, vector<16x2xf32> -> vector<16x2xf32>
      %cst_38 = arith.constant 0.000000e+00 : f32
      %31 = vector.broadcast %cst_38 : f32 to vector<16x2xf32>
      %32 = arith.maximumf %30, %31 : vector<16x2xf32>
      %cst_39 = arith.constant dense<0.000000e+00> : vector<16x32xf32>
      %33 = tpu.matmul %32, %28, %cst_39 {dimension_numbers = #tpu.dot_dimension_numbers<[1], [0], [0], [1], [0, 0, 1, 1], [], []>} : vector<16x2xf32>, vector<2x32xf32>, vector<16x32xf32> -> vector<16x32xf32>
      %34 = vector.extract_strided_slice %33 {offsets = [0, 0], sizes = [2, 32], strides = [1, 1]} : vector<16x32xf32> to vector<2x32xf32>
      %35 = vector.extract_strided_slice %33 {offsets = [8, 0], sizes = [2, 32], strides = [1, 1]} : vector<16x32xf32> to vector<2x32xf32>
      %36 = arith.addf %34, %35 : vector<2x32xf32>
      %37 = arith.negf %36 : vector<2x32xf32>
      %38 = math.exp %37 : vector<2x32xf32>
      %cst_40 = arith.constant 1.000000e+00 : f32
      %39 = vector.broadcast %cst_40 : f32 to vector<2x32xf32>
      %40 = arith.addf %39, %38 : vector<2x32xf32>
      %41 = arith.divf %39, %40 : vector<2x32xf32>
      %c0_41 = arith.constant 0 : index
      %c0_42 = arith.constant 0 : index
      %42 = vector.load %arg5[%c0_41, %c0_42] : memref<2x32xf32, #tpu.memory_space<vmem>>, vector<2x32xf32>
      tpu.vector_store %arg5[%c0_41, %c0_42], %41 {strides = array<i32>} : memref<2x32xf32, #tpu.memory_space<vmem>>, vector<2x32xf32>,
    } else {
    }
    return
  }
  func.func @transform_0(%arg0: i32, %arg1: i32) -> (i32, i32, i32) {
    %c0_i32 = arith.constant 0 : i32
    %c0_i32_0 = arith.constant 0 : i32
    return %arg0, %c0_i32, %arg1 : i32, i32, i32
  }
  func.func @transform_1(%arg0: i32, %arg1: i32) -> (i32, i32) {
    %c0_i32 = arith.constant 0 : i32
    %c0_i32_0 = arith.constant 0 : i32
    %c0_i32_1 = arith.constant 0 : i32
    return %c0_i32, %c0_i32_0 : i32, i32
  }
  func.func @transform_2(%arg0: i32, %arg1: i32) -> (i32, i32) {
    %c0_i32 = arith.constant 0 : i32
    %c0_i32_0 = arith.constant 0 : i32
    %c0_i32_1 = arith.constant 0 : i32
    return %c0_i32, %c0_i32_0 : i32, i32
  }
  func.func @transform_3(%arg0: i32, %arg1: i32) -> (i32, i32) {
    %c0_i32 = arith.constant 0 : i32
    %c0_i32_0 = arith.constant 0 : i32
    return %arg0, %c0_i32 : i32, i32
  }
}

</mosaic_0001>

<llo_original>
// kernel: tpu_custom_call.1
$region0: #{tpu_custom_call.1}
  #allocation0 [shape = 'u32[]', space=smem, size = 0x4, offset = 0x4, fixed_abs, tag = 'smem constant byte address 0x4 - core index']
  #allocation1 [shape = 'u32[144,128]{1,0:T(1,128)}', space=vmem, size = 0x12000, scoped, tag = 'internal scratch']
  #allocation2 [shape = 'f32[2,32,128]{2,1,0:T(8,128)}', space=vmem, size = 0x8000, scoped, tag = 'scratch operand']
  #allocation3 [shape = 'f32[2,32,128]{2,1,0:T(8,128)}', space=vmem, size = 0x8000, scoped, tag = 'scratch operand']
  #allocation4 [shape = 'f32[16,32]{1,0:T(8,128)}', space=vmem, size = 0x2000, scoped, tag = 'scratch operand']
  %s0 = inlined_call_operand.hbm [shape: f32[2,32,256], index: 0, kind: input, shape index: {}]
  %s1 = inlined_call_operand.vmem [shape: f32[32,2], index: 1, kind: input, shape index: {}]
  %s2 = inlined_call_operand.vmem [shape: f32[2,32], index: 2, kind: input, shape index: {}]
  %s3 = inlined_call_operand.hbm [shape: f32[2,32], index: 3, kind: output, shape index: {}]
  %s4 = sld [smem:[#allocation0]]
  $region34: #{tpu_custom_call.1} parent=0
    _
  %s6 = ssub.s32 1, %s4
  %s7 = scalar_select 0, %s6, %s4
  $region1: #{tpu_custom_call.1} parent=0
    #allocation5 [shape = 'u8[65536]{0}', space=vmem, size = 0x10000, scoped, tag = 'input window, operand 0, single buffered']
    #allocation6 [shape = 's32[1]{0}', space=sflag, size = 0x4, scoped, tag = 'scoped memory for tpu_custom_call.1']
    #allocation7 [shape = 's32[1]{0}', space=sflag, size = 0x4, scoped, tag = 'scoped memory for tpu_custom_call.1']
    #allocation8 [shape = 'u8[1024]{0}', space=vmem, size = 0x400, scoped, tag = 'output window, operand 0, single buffered']
    %8 = vsyncpa [#allocation6], 0
    %9 = vsyncpa [#allocation7], 0
    // Predicated region
    $region2: #{tpu_custom_call.1} parent=1 // pred_check
      _
    $region3: #{tpu_custom_call.1} parent=1 // pred_check_branch
      %11 = sbr.rel (0) target = $region5
    $region4: #{tpu_custom_call.1} parent=1 // pred_region
      %s13 = ssub.s32 2048, 2048
      %14 = vsyncadd [#allocation6], %s13
      %s15 = sshll.u32 [#allocation5], 4
      %s16 = int_to_ptr.vmem [resolvable:$true] %s15
      %21 = dma.hbm_to_vmem [thread:$0]  %s0, 2048, %s16, [#allocation6], 256, 256, 16
    $region5: #{tpu_custom_call.1} parent=1 // pred_fallthru
      _
    // Predicated region
    $region6: #{tpu_custom_call.1} parent=1 // pred_check
      _
    $region7: #{tpu_custom_call.1} parent=1 // pred_check_branch
      %23 = sbr.rel (0) target = $region9
    $region8: #{tpu_custom_call.1} parent=1 // pred_region
      _
    $region9: #{tpu_custom_call.1} parent=1 // pred_fallthru
      _
    // Predicated region
    $region10: #{tpu_custom_call.1} parent=1 // pred_check
      _
    $region11: #{tpu_custom_call.1} parent=1 // pred_check_branch
      %25 = sbr.rel (0) target = $region13
    $region12: #{tpu_custom_call.1} parent=1 // pred_region
      _
    $region13: #{tpu_custom_call.1} parent=1 // pred_fallthru
      _
    // Predicated region
    $region14: #{tpu_custom_call.1} parent=1 // pred_check
      _
    $region15: #{tpu_custom_call.1} parent=1 // pred_check_branch
      %27 = sbr.rel (0) target = $region17
    $region16: #{tpu_custom_call.1} parent=1 // pred_region
      %28 = dma.done [#allocation6], 2048
    $region17: #{tpu_custom_call.1} parent=1 // pred_fallthru
      _
    %p29 = scmp.eq.s32.totalorder 0, 0
    // Predicated region
    $region18: #{tpu_custom_call.1} parent=1 // pred_check
      %p30 = pneg %p29
    $region19: #{tpu_custom_call.1} parent=1 // pred_check_branch
      %32 = sbr.rel (%p30) target = $region21
    $region20: #{tpu_custom_call.1} parent=1 // pred_region
      %33 = vst [vmem:[#allocation2] sm:$0xff] 0.0
      %34 = vst [vmem:[#allocation2 + $0x8] sm:$0xff] 0.0
      %35 = vst [vmem:[#allocation2 + $0x10] sm:$0xff] 0.0
      %36 = vst [vmem:[#allocation2 + $0x18] sm:$0xff] 0.0
      %37 = vst [vmem:[#allocation2 + $0x20] sm:$0xff] 0.0
      %38 = vst [vmem:[#allocation2 + $0x28] sm:$0xff] 0.0
      %39 = vst [vmem:[#allocation2 + $0x30] sm:$0xff] 0.0
      %40 = vst [vmem:[#allocation2 + $0x38] sm:$0xff] 0.0
      %41 = vst [vmem:[#allocation3] sm:$0xff] -inf
      %42 = vst [vmem:[#allocation3 + $0x8] sm:$0xff] -inf
      %43 = vst [vmem:[#allocation3 + $0x10] sm:$0xff] -inf
      %44 = vst [vmem:[#allocation3 + $0x18] sm:$0xff] -inf
      %45 = vst [vmem:[#allocation3 + $0x20] sm:$0xff] -inf
      %46 = vst [vmem:[#allocation3 + $0x28] sm:$0xff] -inf
      %47 = vst [vmem:[#allocation3 + $0x30] sm:$0xff] -inf
      %48 = vst [vmem:[#allocation3 + $0x38] sm:$0xff] -inf
    $region21: #{tpu_custom_call.1} parent=1 // pred_fallthru
      _
    %v49 = vld [vmem:[#allocation5] sm:$0xff]
    %v50 = vld [vmem:[#allocation5 + $0x8] sm:$0xff]
    %v51 = vld [vmem:[#allocation5 + $0x10] sm:$0xff]
    %v52 = vld [vmem:[#allocation5 + $0x18] sm:$0xff]
    %v53 = vld [vmem:[#allocation5 + $0x20] sm:$0xff]
    %v54 = vld [vmem:[#allocation5 + $0x28] sm:$0xff]
    %v55 = vld [vmem:[#allocation5 + $0x30] sm:$0xff]
    %v56 = vld [vmem:[#allocation5 + $0x38] sm:$0xff]
    %v57 = vld [vmem:[#allocation5 + $0x40] sm:$0xff]
    %v58 = vld [vmem:[#allocation5 + $0x48] sm:$0xff]
    %v59 = vld [vmem:[#allocation5 + $0x50] sm:$0xff]
    %v60 = vld [vmem:[#allocation5 + $0x58] sm:$0xff]
    %v61 = vld [vmem:[#allocation5 + $0x60] sm:$0xff]
    %v62 = vld [vmem:[#allocation5 + $0x68] sm:$0xff]
    %v63 = vld [vmem:[#allocation5 + $0x70] sm:$0xff]
    %v64 = vld [vmem:[#allocation5 + $0x78] sm:$0xff]
    %v65 = vld [vmem:[#allocation2] sm:$0xff]
    %v66 = vld [vmem:[#allocation2 + $0x8] sm:$0xff]
    %v67 = vld [vmem:[#allocation2 + $0x10] sm:$0xff]
    %v68 = vld [vmem:[#allocation2 + $0x18] sm:$0xff]
    %v69 = vld [vmem:[#allocation2 + $0x20] sm:$0xff]
    %v70 = vld [vmem:[#allocation2 + $0x28] sm:$0xff]
    %v71 = vld [vmem:[#allocation2 + $0x30] sm:$0xff]
    %v72 = vld [vmem:[#allocation2 + $0x38] sm:$0xff]
    %v73 = vld [vmem:[#allocation3] sm:$0xff]
    %v74 = vld [vmem:[#allocation3 + $0x8] sm:$0xff]
    %v75 = vld [vmem:[#allocation3 + $0x10] sm:$0xff]
    %v76 = vld [vmem:[#allocation3 + $0x18] sm:$0xff]
    %v77 = vld [vmem:[#allocation3 + $0x20] sm:$0xff]
    %v78 = vld [vmem:[#allocation3 + $0x28] sm:$0xff]
    %v79 = vld [vmem:[#allocation3 + $0x30] sm:$0xff]
    %v80 = vld [vmem:[#allocation3 + $0x38] sm:$0xff]
    %v81 = vadd.f32 %v65, %v49
    %v82 = vadd.f32 %v66, %v51
    %v83 = vadd.f32 %v67, %v53
    %v84 = vadd.f32 %v68, %v55
    %v85 = vadd.f32 %v69, %v57
    %v86 = vadd.f32 %v70, %v59
    %v87 = vadd.f32 %v71, %v61
    %v88 = vadd.f32 %v72, %v63
    %v89 = vmax.f32 %v73, %v49
    %v90 = vmax.f32 %v74, %v51
    %v91 = vmax.f32 %v75, %v53
    %v92 = vmax.f32 %v76, %v55
    %v93 = vmax.f32 %v77, %v57
    %v94 = vmax.f32 %v78, %v59
    %v95 = vmax.f32 %v79, %v61
    %v96 = vmax.f32 %v80, %v63
    %v97 = vadd.f32 %v81, %v50
    %v98 = vadd.f32 %v82, %v52
    %v99 = vadd.f32 %v83, %v54
    %v100 = vadd.f32 %v84, %v56
    %v101 = vadd.f32 %v85, %v58
    %v102 = vadd.f32 %v86, %v60
    %v103 = vadd.f32 %v87, %v62
    %v104 = vadd.f32 %v88, %v64
    %v105 = vmax.f32 %v89, %v50
    %v106 = vmax.f32 %v90, %v52
    %v107 = vmax.f32 %v91, %v54
    %v108 = vmax.f32 %v92, %v56
    %v109 = vmax.f32 %v93, %v58
    %v110 = vmax.f32 %v94, %v60
    %v111 = vmax.f32 %v95, %v62
    %v112 = vmax.f32 %v96, %v64
    %113 = vst [vmem:[#allocation2] sm:$0xff] %v97
    %114 = vst [vmem:[#allocation2 + $0x8] sm:$0xff] %v98
    %115 = vst [vmem:[#allocation2 + $0x10] sm:$0xff] %v99
    %116 = vst [vmem:[#allocation2 + $0x18] sm:$0xff] %v100
    %117 = vst [vmem:[#allocation2 + $0x20] sm:$0xff] %v101
    %118 = vst [vmem:[#allocation2 + $0x28] sm:$0xff] %v102
    %119 = vst [vmem:[#allocation2 + $0x30] sm:$0xff] %v103
    %120 = vst [vmem:[#allocation2 + $0x38] sm:$0xff] %v104
    %121 = vst [vmem:[#allocation3] sm:$0xff] %v105
    %122 = vst [vmem:[#allocation3 + $0x8] sm:$0xff] %v106
    %123 = vst [vmem:[#allocation3 + $0x10] sm:$0xff] %v107
    %124 = vst [vmem:[#allocation3 + $0x18] sm:$0xff] %v108
    %125 = vst [vmem:[#allocation3 + $0x20] sm:$0xff] %v109
    %126 = vst [vmem:[#allocation3 + $0x28] sm:$0xff] %v110
    %127 = vst [vmem:[#allocation3 + $0x30] sm:$0xff] %v111
    %128 = vst [vmem:[#allocation3 + $0x38] sm:$0xff] %v112
    // Predicated region
    $region22: #{tpu_custom_call.1} parent=1 // pred_check
      %p129 = pneg %p29
    $region23: #{tpu_custom_call.1} parent=1 // pred_check_branch
      %131 = sbr.rel (%p129) target = $region25
    $region24: #{tpu_custom_call.1} parent=1 // pred_region
      %v132 = vld [vmem:[#allocation2] sm:$0xff]
      %v133 = vld [vmem:[#allocation2 + $0x8] sm:$0xff]
      %v134 = vld [vmem:[#allocation2 + $0x10] sm:$0xff]
      %v135 = vld [vmem:[#allocation2 + $0x18] sm:$0xff]
      %v136 = vld [vmem:[#allocation2 + $0x20] sm:$0xff]
      %v137 = vld [vmem:[#allocation2 + $0x28] sm:$0xff]
      %v138 = vld [vmem:[#allocation2 + $0x30] sm:$0xff]
      %v139 = vld [vmem:[#allocation2 + $0x38] sm:$0xff]
      %140 = vadd.xlane.f32.xlu0 %v132
      %v141 = vpop.xlane.xlu0 %140
      %142 = vadd.xlane.f32.xlu0 %v133
      %v143 = vpop.xlane.xlu0 %142
      %144 = vadd.xlane.f32.xlu0 %v134
      %v145 = vpop.xlane.xlu0 %144
      %146 = vadd.xlane.f32.xlu0 %v135
      %v147 = vpop.xlane.xlu0 %146
      %148 = vadd.xlane.f32.xlu0 %v136
      %v149 = vpop.xlane.xlu0 %148
      %150 = vadd.xlane.f32.xlu0 %v137
      %v151 = vpop.xlane.xlu0 %150
      %152 = vadd.xlane.f32.xlu0 %v138
      %v153 = vpop.xlane.xlu0 %152
      %154 = vadd.xlane.f32.xlu0 %v139
      %v155 = vpop.xlane.xlu0 %154
      %v156 = vmul.f32 %v141, 0.00390625
      %v157 = vmul.f32 %v143, 0.00390625
      %v158 = vmul.f32 %v145, 0.00390625
      %v159 = vmul.f32 %v147, 0.00390625
      %v160 = vmul.f32 %v149, 0.00390625
      %v161 = vmul.f32 %v151, 0.00390625
      %v162 = vmul.f32 %v153, 0.00390625
      %v163 = vmul.f32 %v155, 0.00390625
      %v164 = vld [vmem:[#allocation3] sm:$0xff]
      %v165 = vld [vmem:[#allocation3 + $0x8] sm:$0xff]
      %v166 = vld [vmem:[#allocation3 + $0x10] sm:$0xff]
      %v167 = vld [vmem:[#allocation3 + $0x18] sm:$0xff]
      %v168 = vld [vmem:[#allocation3 + $0x20] sm:$0xff]
      %v169 = vld [vmem:[#allocation3 + $0x28] sm:$0xff]
      %v170 = vld [vmem:[#allocation3 + $0x30] sm:$0xff]
      %v171 = vld [vmem:[#allocation3 + $0x38] sm:$0xff]
      %172 = vmax.xlane.f32.xlu0 %v164
      %v173 = vpop.xlane.xlu0 %172
      %174 = vmax.xlane.f32.xlu0 %v165
      %v175 = vpop.xlane.xlu0 %174
      %176 = vmax.xlane.f32.xlu0 %v166
      %v177 = vpop.xlane.xlu0 %176
      %178 = vmax.xlane.f32.xlu0 %v167
      %v179 = vpop.xlane.xlu0 %178
      %180 = vmax.xlane.f32.xlu0 %v168
      %v181 = vpop.xlane.xlu0 %180
      %182 = vmax.xlane.f32.xlu0 %v169
      %v183 = vpop.xlane.xlu0 %182
      %184 = vmax.xlane.f32.xlu0 %v170
      %v185 = vpop.xlane.xlu0 %184
      %186 = vmax.xlane.f32.xlu0 %v171
      %v187 = vpop.xlane.xlu0 %186
      %vm188 = vcmask 261120
      %189 = vst.msk [vmem:[#allocation4] sm:$0xff] %vm188, 0.0
      %190 = vst.msk [vmem:[#allocation4 + $0x8] sm:$0xff] %vm188, 0.0
      %v199 = vlaneseq
      %v200 = vand.u32 %v199, 127
      %v201 = vlaneseq
      %v202 = vshrl.u32 %v201, 7
      %v203 = vsub.s32 %v200, %v202
      %v204 = vrot.slane %v156, %v203
      %v205 = vadd.s32 %v200, 4294967288
      %v206 = vlaneseq
      %v207 = vshrl.u32 %v206, 7
      %v208 = vsub.s32 %v205, %v207
      %v209 = vrot.slane %v157, %v208
      %vm210 = vcmask 130112
      %v211 = vsel %vm210, %v209, %v204
      %v212 = vadd.s32 %v200, 4294967280
      %v213 = vlaneseq
      %v214 = vshrl.u32 %v213, 7
      %v215 = vsub.s32 %v212, %v214
      %v216 = vrot.slane %v158, %v215
      %vm217 = vcmask 195712
      %v218 = vsel %vm217, %v216, %v211
      %v219 = vadd.s32 %v200, 4294967272
      %v220 = vlaneseq
      %v221 = vshrl.u32 %v220, 7
      %v222 = vsub.s32 %v219, %v221
      %v223 = vrot.slane %v159, %v222
      %vm224 = vcmask 261312
      %v225 = vsel %vm224, %v223, %v218
      %v226 = vlaneseq
      %v227 = vshrl.u32 %v226, 7
      %v228 = vsub.s32 %v200, %v227
      %v229 = vrot.slane %v160, %v228
      %v230 = vlaneseq
      %v231 = vshrl.u32 %v230, 7
      %v232 = vsub.s32 %v205, %v231
      %v233 = vrot.slane %v161, %v232
      %v234 = vsel %vm210, %v233, %v229
      %v235 = vlaneseq
      %v236 = vshrl.u32 %v235, 7
      %v237 = vsub.s32 %v212, %v236
      %v238 = vrot.slane %v162, %v237
      %v239 = vsel %vm217, %v238, %v234
      %v240 = vlaneseq
      %v241 = vshrl.u32 %v240, 7
      %v242 = vsub.s32 %v219, %v241
      %v243 = vrot.slane %v163, %v242
      %v244 = vsel %vm224, %v243, %v239
      %vm245 = vcmask 1041409
      %v246 = vsel %vm245, %v244, %v225
      %vm248 = vcmask 254976
      %249 = vst.msk [vmem:[#allocation4] sm:$0x3] %vm248, %v246
      %v258 = vlaneseq
      %v259 = vshrl.u32 %v258, 7
      %v260 = vsub.s32 %v200, %v259
      %v261 = vrot.slane %v173, %v260
      %v262 = vlaneseq
      %v263 = vshrl.u32 %v262, 7
      %v264 = vsub.s32 %v205, %v263
      %v265 = vrot.slane %v175, %v264
      %v266 = vsel %vm210, %v265, %v261
      %v267 = vlaneseq
      %v268 = vshrl.u32 %v267, 7
      %v269 = vsub.s32 %v212, %v268
      %v270 = vrot.slane %v177, %v269
      %v271 = vsel %vm217, %v270, %v266
      %v272 = vlaneseq
      %v273 = vshrl.u32 %v272, 7
      %v274 = vsub.s32 %v219, %v273
      %v275 = vrot.slane %v179, %v274
      %v276 = vsel %vm224, %v275, %v271
      %v277 = vlaneseq
      %v278 = vshrl.u32 %v277, 7
      %v279 = vsub.s32 %v200, %v278
      %v280 = vrot.slane %v181, %v279
      %v281 = vlaneseq
      %v282 = vshrl.u32 %v281, 7
      %v283 = vsub.s32 %v205, %v282
      %v284 = vrot.slane %v183, %v283
      %v285 = vsel %vm210, %v284, %v280
      %v286 = vlaneseq
      %v287 = vshrl.u32 %v286, 7
      %v288 = vsub.s32 %v212, %v287
      %v289 = vrot.slane %v185, %v288
      %v290 = vsel %vm217, %v289, %v285
      %v291 = vlaneseq
      %v292 = vshrl.u32 %v291, 7
      %v293 = vsub.s32 %v219, %v292
      %v294 = vrot.slane %v187, %v293
      %v295 = vsel %vm224, %v294, %v290
      %v296 = vsel %vm245, %v295, %v276
      %298 = vst.msk [vmem:[#allocation4 + $0x8] sm:$0x3] %vm248, %v296
      %v299 = vld [vmem:[%s1] sm:$0xff]
      %v300 = vld [vmem:[%s1 + $0x8] sm:$0xff]
      %v301 = vld [vmem:[%s1 + $0x10] sm:$0xff]
      %v302 = vld [vmem:[%s1 + $0x18] sm:$0xff]
      %v303 = vld [vmem:[%s2] sm:$0x3]
      %v304 = vld [vmem:[#allocation4] sm:$0xff]
      %v305 = vld [vmem:[#allocation4 + $0x8] sm:$0xff]
      %v307 = vsel %vm188, %v304, 0
      %v310 = vsel %vm188, %v305, 0
      %312 = vmatprep.subr.mxu0 0.0
      %313 = vmatpush1.msra.mxu0 0.0
      %314 = vmatprep.subr.mxu0 0.0
      %315 = vmatpush1.msra.mxu0 0.0
      %316 = vmatprep.subr.mxu0 0.0
      %317 = vmatpush1.msra.mxu0 0.0
      %318 = vmatprep.subr.mxu0 0.0
      %319 = vmatpush1.msra.mxu0 0.0
      %320 = vmatprep.subr.mxu0 0.0
      %321 = vmatpush1.msra.mxu0 0.0
      %322 = vmatprep.subr.mxu0 0.0
      %323 = vmatpush1.msra.mxu0 0.0
      %324 = vmatprep.subr.mxu0 0.0
      %325 = vmatpush1.msra.mxu0 0.0
      %326 = vmatprep.subr.mxu0 0.0
      %327 = vmatpush1.msra.mxu0 0.0
      %328 = vmatprep.subr.mxu0 0.0
      %329 = vmatpush1.msra.mxu0 0.0
      %330 = vmatprep.subr.mxu0 0.0
      %331 = vmatpush1.msra.mxu0 0.0
      %332 = vmatprep.subr.mxu0 0.0
      %333 = vmatpush1.msra.mxu0 0.0
      %334 = vmatprep.subr.mxu0 0.0
      %335 = vmatpush1.msra.mxu0 0.0
      %336 = vmatprep.subr.mxu0 0.0
      %337 = vmatpush1.msra.mxu0 %v302
      %338 = vmatprep.subr.mxu0 0.0
      %339 = vmatpush1.msra.mxu0 %v301
      %340 = vmatprep.subr.mxu0 0.0
      %341 = vmatpush1.msra.mxu0 %v300
      %342 = vmatprep.subr.mxu0 0.0
      %343 = vmatpush1.msra.mxu0 %v299
      %344 = vmatprep.subr.mxu0 0.0
      %345 = vmatpush2.msra.mxu0 0.0
      %346 = vmatprep.subr.mxu0 0.0
      %347 = vmatpush2.msra.mxu0 0.0
      %348 = vmatprep.subr.mxu0 0.0
      %349 = vmatpush2.msra.mxu0 0.0
      %350 = vmatprep.subr.mxu0 0.0
      %351 = vmatpush2.msra.mxu0 0.0
      %352 = vmatprep.subr.mxu0 0.0
      %353 = vmatpush2.msra.mxu0 0.0
      %354 = vmatprep.subr.mxu0 0.0
      %355 = vmatpush2.msra.mxu0 0.0
      %356 = vmatprep.subr.mxu0 0.0
      %357 = vmatpush2.msra.mxu0 0.0
      %358 = vmatprep.subr.mxu0 0.0
      %359 = vmatpush2.msra.mxu0 0.0
      %360 = vmatprep.subr.mxu0 0.0
      %361 = vmatpush2.msra.mxu0 0.0
      %362 = vmatprep.subr.mxu0 0.0
      %363 = vmatpush2.msra.mxu0 0.0
      %364 = vmatprep.subr.mxu0 0.0
      %365 = vmatpush2.msra.mxu0 0.0
      %366 = vmatprep.subr.mxu0 0.0
      %367 = vmatpush2.msra.mxu0 0.0
      %368 = vmatprep.subr.mxu0 0.0
      %369 = vmatpush2.msra.mxu0 0.0
      %370 = vmatprep.subr.mxu0 0.0
      %371 = vmatpush2.msra.mxu0 0.0
      %372 = vmatprep.subr.mxu0 0.0
      %373 = vmatpush2.msra.mxu0 0.0
      %374 = vmatprep.subr.mxu0 0.0
      %375 = vmatpush2.msra.mxu0 0.0
      %376 = vmatprep.mubr.f32.mxu0 0.0
      %377 = vmatmul.mubr.f32.gmra.mxu0 %v307
      %v378 = vpop.f32.mrf.mxu0
      %v379 = vadd.f32 0.0, %v378
      %v380 = vpop.f32.mrf.mxu0
      %381 = vmatprep.mubr.f32.mxu0 0.0
      %382 = vmatmul.mubr.f32.gmra.mxu0 %v310
      %v383 = vpop.f32.mrf.mxu0
      %v384 = vadd.f32 0.0, %v383
      %v385 = vpop.f32.mrf.mxu0
      %386 = vdwg.mxu0
      %v387 = vmax.f32 %v379, 0.0
      %v388 = vmax.f32 %v384, 0.0
      %vm389 = vcmask 15360
      %v391 = vsel %vm389, %v387, 0
      %v394 = vsel %vm389, %v388, 0
      %vm396 = vcmask 1041408
      %v398 = vsel %vm396, %v303, 0
      %400 = vmatprep.subr.mxu0 0.0
      %401 = vmatpush1.msra.mxu0 0.0
      %402 = vmatprep.subr.mxu0 0.0
      %403 = vmatpush1.msra.mxu0 0.0
      %404 = vmatprep.subr.mxu0 0.0
      %405 = vmatpush1.msra.mxu0 0.0
      %406 = vmatprep.subr.mxu0 0.0
      %407 = vmatpush1.msra.mxu0 0.0
      %408 = vmatprep.subr.mxu0 0.0
      %409 = vmatpush1.msra.mxu0 0.0
      %410 = vmatprep.subr.mxu0 0.0
      %411 = vmatpush1.msra.mxu0 0.0
      %412 = vmatprep.subr.mxu0 0.0
      %413 = vmatpush1.msra.mxu0 0.0
      %414 = vmatprep.subr.mxu0 0.0
      %415 = vmatpush1.msra.mxu0 0.0
      %416 = vmatprep.subr.mxu0 0.0
      %417 = vmatpush1.msra.mxu0 0.0
      %418 = vmatprep.subr.mxu0 0.0
      %419 = vmatpush1.msra.mxu0 0.0
      %420 = vmatprep.subr.mxu0 0.0
      %421 = vmatpush1.msra.mxu0 0.0
      %422 = vmatprep.subr.mxu0 0.0
      %423 = vmatpush1.msra.mxu0 0.0
      %424 = vmatprep.subr.mxu0 0.0
      %425 = vmatpush1.msra.mxu0 0.0
      %426 = vmatprep.subr.mxu0 0.0
      %427 = vmatpush1.msra.mxu0 0.0
      %428 = vmatprep.subr.mxu0 0.0
      %429 = vmatpush1.msra.mxu0 0.0
      %430 = vmatprep.subr.mxu0 0.0
      %431 = vmatpush1.msra.mxu0 %v398
      %432 = vmatprep.subr.mxu0 0.0
      %433 = vmatpush2.msra.mxu0 0.0
      %434 = vmatprep.subr.mxu0 0.0
      %435 = vmatpush2.msra.mxu0 0.0
      %436 = vmatprep.subr.mxu0 0.0
      %437 = vmatpush2.msra.mxu0 0.0
      %438 = vmatprep.subr.mxu0 0.0
      %439 = vmatpush2.msra.mxu0 0.0
      %440 = vmatprep.subr.mxu0 0.0
      %441 = vmatpush2.msra.mxu0 0.0
      %442 = vmatprep.subr.mxu0 0.0
      %443 = vmatpush2.msra.mxu0 0.0
      %444 = vmatprep.subr.mxu0 0.0
      %445 = vmatpush2.msra.mxu0 0.0
      %446 = vmatprep.subr.mxu0 0.0
      %447 = vmatpush2.msra.mxu0 0.0
      %448 = vmatprep.subr.mxu0 0.0
      %449 = vmatpush2.msra.mxu0 0.0
      %450 = vmatprep.subr.mxu0 0.0
      %451 = vmatpush2.msra.mxu0 0.0
      %452 = vmatprep.subr.mxu0 0.0
      %453 = vmatpush2.msra.mxu0 0.0
      %454 = vmatprep.subr.mxu0 0.0
      %455 = vmatpush2.msra.mxu0 0.0
      %456 = vmatprep.subr.mxu0 0.0
      %457 = vmatpush2.msra.mxu0 0.0
      %458 = vmatprep.subr.mxu0 0.0
      %459 = vmatpush2.msra.mxu0 0.0
      %460 = vmatprep.subr.mxu0 0.0
      %461 = vmatpush2.msra.mxu0 0.0
      %462 = vmatprep.subr.mxu0 0.0
      %463 = vmatpush2.msra.mxu0 0.0
      %464 = vmatprep.mubr.f32.mxu0 0.0
      %465 = vmatmul.mubr.f32.gmra.mxu0 %v391
      %v466 = vpop.f32.mrf.mxu0
      %v467 = vadd.f32 0.0, %v466
      %v468 = vpop.f32.mrf.mxu0
      %469 = vmatprep.mubr.f32.mxu0 0.0
      %470 = vmatmul.mubr.f32.gmra.mxu0 %v394
      %v471 = vpop.f32.mrf.mxu0
      %v472 = vadd.f32 0.0, %v471
      %v473 = vpop.f32.mrf.mxu0
      %474 = vdwg.mxu0
      %v475 = vadd.f32 %v467, %v472
      %v476 = vxor.u32 %v475, 2147483648
      %v477 = vmul.f32 %v476, 1.442695
      %v478 = vpow.pop %v477
      %v479 = vadd.f32 %v478, 1.0
      %v480 = vrcp.pop %v479
      %v481 = vmul.f32 1.0, %v480
      %482 = vst.msk [vmem:[#allocation8] sm:$0x3] %vm248, %v481
    $region25: #{tpu_custom_call.1} parent=1 // pred_fallthru
      _
    // Predicated region
    $region26: #{tpu_custom_call.1} parent=1 // pred_check
      _
    $region27: #{tpu_custom_call.1} parent=1 // pred_check_branch
      %484 = sbr.rel (0) target = $region29
    $region28: #{tpu_custom_call.1} parent=1 // pred_region
      %s486 = ssub.s32 32, 32
      %487 = vsyncadd [#allocation7], %s486
      %s489 = sshll.u32 [#allocation8], 4
      %s490 = int_to_ptr.vmem [resolvable:$true] %s489
      %492 = dma.vmem_to_hbm [thread:$0]  %s490, 32, %s3, [#allocation7]
    $region29: #{tpu_custom_call.1} parent=1 // pred_fallthru
      _
    // Predicated region
    $region30: #{tpu_custom_call.1} parent=1 // pred_check
      _
    $region31: #{tpu_custom_call.1} parent=1 // pred_check_branch
      %494 = sbr.rel (0) target = $region33
    $region32: #{tpu_custom_call.1} parent=1 // pred_region
      %495 = dma.done [#allocation7], 32
    $region33: #{tpu_custom_call.1} parent=1 // pred_fallthru
      _
    %496 = vsyncpa [#allocation6], 1
    %497 = vsyncpa [#allocation7], 1

</llo_original>
